<compile_context>
chip_gen: v7x
topology: tpu7x:2x2x1
jax: 0.10.0
libtpu: 0.0.40
codegen_flags: <defaults>
</compile_context>

<pallas_src>
import math

import jax
import jax.numpy as jnp
from jax.experimental import pallas as pl
from jax.experimental.pallas import tpu as pltpu


def _gfp_kernel(x_ref, w_ref, out_ref):
    # x_ref: (TB, 1) f32, w_ref: (1, TH) f32 (already scaled by 2*pi),
    # out_ref: (TB, TH) out_dtype.  grid axis 2 selects sin (0) vs cos (1).
    proj = x_ref[...] * w_ref[...]          # rank-1 outer product on the VPU
    s = pl.program_id(2)

    @pl.when(s == 0)
    def _():
        out_ref[...] = jnp.sin(proj).astype(out_ref.dtype)

    @pl.when(s == 1)
    def _():
        out_ref[...] = jnp.cos(proj).astype(out_ref.dtype)


def _round_up(x, m):
    return ((x + m - 1) // m) * m


def _gfp_reference(x, W, out_dtype):
    w = W.astype(jnp.float32) * (2.0 * math.pi)
    x_proj = x.astype(jnp.float32)[:, None] * w[None, :]
    return jnp.concatenate([jnp.sin(x_proj), jnp.cos(x_proj)], -1).astype(out_dtype)


def gaussian_fourier_projection(x, W, *, out_dtype=jnp.float32,
                                force_pallas=False,
                                small_fallback_bytes=256 * 1024):
    """x: (B,) float noise levels, W: (H,) fixed Gaussian projection.
    Returns (B, 2*H) = concat([sin(2*pi*x*W), cos(2*pi*x*W)], -1) in out_dtype.
    Pass out_dtype=jnp.bfloat16 when the consumer accepts it (halves the
    HBM writeback, the dominant cost on v5e/v6e at large sizes)."""
    B = x.shape[0]
    H = W.shape[0]
    out_bytes = jnp.dtype(out_dtype).itemsize

    # Tiny-input fallback: the whole problem is a few KiB; launch + pad/slice
    # overhead would dominate the Pallas path.
    if not force_pallas and B * 2 * H * out_bytes < small_fallback_bytes:
        return _gfp_reference(x, W, out_dtype)

    # ---- lane (H) tiling: multiples of 128 so every store is unmasked and
    # lane-dense; cap TH so the row tile can stay large for huge embeddings.
    H128 = _round_up(H, 128)
    TH = min(H128, 2048)
    H_pad = _round_up(H, TH)          # multiple of TH (and of 128)
    nh = H_pad // TH

    # ---- row (B) tiling: budget the VMEM working set per grid step:
    #   proj (f32) + sin/cos result (f32) + 2x double-buffered output tile.
    per_elem = 8 + 2 * out_bytes
    budget = 20 * 1024 * 1024         # conservative: fits v7x scoped VMEM too
    tb_cap = max(8, min(4096, (budget // (TH * per_elem)) // 8 * 8))
    nb = pl.cdiv(max(B, 1), tb_cap)
    TB = _round_up(pl.cdiv(B, nb), 8)  # even split across nb tiles, sublane-aligned
    B_pad = nb * TB

    # Fold 2*pi into W once here (cost ~H) instead of scaling the full
    # (TB, TH) tile every grid step inside the VALU-bound kernel.
    x2 = jnp.pad(x.astype(jnp.float32), (0, B_pad - B)).reshape(B_pad, 1)
    w2 = jnp.pad(W.astype(jnp.float32) * (2.0 * math.pi),
                 (0, H_pad - H)).reshape(1, H_pad)

    cost = pl.CostEstimate(
        flops=2 * B_pad * H_pad,
        transcendentals=2 * B_pad * H_pad,
        bytes_accessed=(x2.size + w2.size) * 4 + B_pad * 2 * H_pad * out_bytes,
    )

    out = pl.pallas_call(
        _gfp_kernel,
        out_shape=jax.ShapeDtypeStruct((B_pad, 2 * H_pad), out_dtype),
        grid=(nb, nh, 2),
        in_specs=[
            pl.BlockSpec((TB, 1), lambda i, j, s: (i, 0)),     # x rows
            pl.BlockSpec((1, TH), lambda i, j, s: (0, j)),     # W lane-tile
        ],
        # sin tiles land in columns [0, H_pad), cos tiles in [H_pad, 2*H_pad).
        out_specs=pl.BlockSpec((TB, TH), lambda i, j, s: (i, s * nh + j)),
        compiler_params=pltpu.CompilerParams(
            # Every output block is written exactly once and independently;
            # the sin/cos axis guarantees >=2 shardable tiles for v7x megacore.
            dimension_semantics=("parallel", "parallel", "parallel"),
            vmem_limit_bytes=32 * 1024 * 1024,
        ),
        cost_estimate=cost,
    )(x2, w2)

    # Strip padding.  Fast path when nothing was padded.
    if H_pad == H and B_pad == B:
        return out
    if H_pad == H:
        return out[:B]
    sin_part = out[:B, :H]
    cos_part = out[:B, H_pad:H_pad + H]
    return jnp.concatenate([sin_part, cos_part], axis=-1)


if __name__ == "__main__":
    key = jax.random.PRNGKey(0)
    kx, kw, kx2, kw2 = jax.random.split(key, 4)

    # Case 1: module defaults (embedding_size=256 -> H=128), small batch.
    embedding_size = 256
    B = 8
    W = jax.random.normal(kw, (embedding_size // 2,), dtype=jnp.float32)  # scale=1.0
    x = jax.random.uniform(kx, (B,), dtype=jnp.float32)

    emb = gaussian_fourier_projection(x, W, force_pallas=True)   # Pallas path
    emb = jax.block_until_ready(emb)
    ref = _gfp_reference(x, W, jnp.float32)
    assert emb.shape == (B, embedding_size)
    assert jnp.allclose(emb, ref, atol=1e-5, rtol=1e-5)

    # Default path at tiny size uses the jnp fallback; check it too.
    emb_fb = jax.block_until_ready(gaussian_fourier_projection(x, W))
    assert jnp.allclose(emb_fb, ref, atol=1e-5, rtol=1e-5)

    # Case 2: non-128-multiple half-size to exercise the padding/slice path.
    H2, B2 = 200, 24
    W2 = jax.random.normal(kw2, (H2,), dtype=jnp.float32) * 0.5
    x2 = jax.random.uniform(kx2, (B2,), dtype=jnp.float32)
    emb2 = jax.block_until_ready(
        gaussian_fourier_projection(x2, W2, force_pallas=True))
    ref2 = _gfp_reference(x2, W2, jnp.float32)
    assert emb2.shape == (B2, 2 * H2)
    assert jnp.allclose(emb2, ref2, atol=1e-5, rtol=1e-5)

    print("KERNEL_OK")
</pallas_src>

<mosaic_0001>
module attributes {stable_mosaic.version = 11 : i64} {
  func.func @_gfp_kernel(%arg0: i32, %arg1: i32, %arg2: i32, %arg3: memref<8x1xf32, #tpu.memory_space<vmem>>, %arg4: memref<1x128xf32, #tpu.memory_space<vmem>>, %arg5: memref<8x128xf32, #tpu.memory_space<vmem>>) attributes {dimension_semantics = [#tpu.dimension_semantics<parallel>, #tpu.dimension_semantics<parallel>, #tpu.dimension_semantics<parallel>], iteration_bounds = array<i64: 1, 1, 2>, scalar_prefetch = 0 : i64, scratch_operands = 0 : i64, tpu.core_type = #tpu.core_type<tc>, window_params = [{transform_indices = @transform_0, window_bounds = array<i64: 8, 1>}, {transform_indices = @transform_1, window_bounds = array<i64: 1, 128>}, {transform_indices = @transform_2, window_bounds = array<i64: 8, 128>}]} {
    %c0 = arith.constant 0 : index
    %c0_0 = arith.constant 0 : index
    %0 = vector.load %arg3[%c0, %c0_0] : memref<8x1xf32, #tpu.memory_space<vmem>>, vector<8x1xf32>
    %c0_1 = arith.constant 0 : index
    %c0_2 = arith.constant 0 : index
    %1 = vector.load %arg4[%c0_1, %c0_2] : memref<1x128xf32, #tpu.memory_space<vmem>>, vector<1x128xf32>
    %2 = vector.broadcast %0 : vector<8x1xf32> to vector<8x128xf32>
    %3 = vector.broadcast %1 : vector<1x128xf32> to vector<8x128xf32>
    %4 = arith.mulf %2, %3 : vector<8x128xf32>
    %c0_i32 = arith.constant 0 : i32
    %5 = arith.cmpi eq, %arg2, %c0_i32 : i32
    %6 = arith.extui %5 : i1 to i32
    %c0_i32_3 = arith.constant 0 : i32
    %7 = arith.cmpi ne, %6, %c0_i32_3 : i32
    scf.if %7 {
      %11 = math.sin %4 : vector<8x128xf32>
      %c0_5 = arith.constant 0 : index
      %c0_6 = arith.constant 0 : index
      %12 = vector.load %arg5[%c0_5, %c0_6] : memref<8x128xf32, #tpu.memory_space<vmem>>, vector<8x128xf32>
      tpu.vector_store %arg5[%c0_5, %c0_6], %11 {strides = array<i32>} : memref<8x128xf32, #tpu.memory_space<vmem>>, vector<8x128xf32>,
    } else {
    }
    %c1_i32 = arith.constant 1 : i32
    %8 = arith.cmpi eq, %arg2, %c1_i32 : i32
    %9 = arith.extui %8 : i1 to i32
    %c0_i32_4 = arith.constant 0 : i32
    %10 = arith.cmpi ne, %9, %c0_i32_4 : i32
    scf.if %10 {
      %11 = math.cos %4 : vector<8x128xf32>
      %c0_5 = arith.constant 0 : index
      %c0_6 = arith.constant 0 : index
      %12 = vector.load %arg5[%c0_5, %c0_6] : memref<8x128xf32, #tpu.memory_space<vmem>>, vector<8x128xf32>
      tpu.vector_store %arg5[%c0_5, %c0_6], %11 {strides = array<i32>} : memref<8x128xf32, #tpu.memory_space<vmem>>, vector<8x128xf32>,
    } else {
    }
    return
  }
  func.func @transform_0(%arg0: i32, %arg1: i32, %arg2: i32) -> (i32, i32) {
    %c0_i32 = arith.constant 0 : i32
    %c0_i32_0 = arith.constant 0 : i32
    return %arg0, %c0_i32 : i32, i32
  }
  func.func @transform_1(%arg0: i32, %arg1: i32, %arg2: i32) -> (i32, i32) {
    %c0_i32 = arith.constant 0 : i32
    %c0_i32_0 = arith.constant 0 : i32
    return %c0_i32, %arg1 : i32, i32
  }
  func.func @transform_2(%arg0: i32, %arg1: i32, %arg2: i32) -> (i32, i32) {
    %c1_i32 = arith.constant 1 : i32
    %0 = arith.muli %arg2, %c1_i32 : i32
    %1 = arith.addi %0, %arg1 : i32
    %c0_i32 = arith.constant 0 : i32
    return %arg0, %1 : i32, i32
  }
}

</mosaic_0001>

<llo_original>
// kernel: tpu_custom_call.1
$region0: #{tpu_custom_call.1}
  #allocation0 [shape = 'u32[]', space=smem, size = 0x4, offset = 0x4, fixed_abs, tag = 'smem constant byte address 0x4 - core index']
  #allocation1 [shape = 'u32[144,128]{1,0:T(1,128)}', space=vmem, size = 0x12000, scoped, tag = 'internal scratch']
  %s0 = inlined_call_operand.vmem [shape: f32[8,1], index: 0, kind: input, shape index: {}]
  %s1 = inlined_call_operand.vmem [shape: f32[1,128], index: 1, kind: input, shape index: {}]
  %s2 = inlined_call_operand.hbm [shape: f32[8,256], index: 2, kind: output, shape index: {}]
  %s3 = sld [smem:[#allocation0]]
  $region49: #{tpu_custom_call.1} parent=0
    _
  %s5 = ssub.s32 1, %s3
  %s6 = scalar_select 0, %s5, %s3
  $region1: #{tpu_custom_call.1} parent=0
    #allocation2 [shape = 'u8[8192]{0}', space=vmem, size = 0x2000, scoped, tag = 'output window, operand 0']
    #allocation3 [shape = 's32[2]{0}', space=sflag, size = 0x8, scoped, tag = 'scoped memory for tpu_custom_call.1']
    %7 = vsyncpa [#allocation3], 0
    %s8 = scalar_lea.sflag [#allocation3], 1
    %9 = vsyncpa %s8, 0
    loop: start=0, step=1, limit=4
    $region2: #{tpu_custom_call.1} parent=1 // loop_pre_header
      _
    $region3: #{tpu_custom_call.1} parent=1 // loop_header
      %s11 = sphi 0, %s15
      %p12 = scmp.ge.s32.totalorder %s11, 4
      %s18 = sphi 0, %s37
      %s19 = sphi 0, %s33
      %s20 = sphi 0, %s29
      %s21 = sphi 0, %s18
      %s22 = sphi 0, %s19
      %s23 = sphi 0, %s20
      %s24 = sphi 0, %s21
      %s25 = sphi 0, %s22
      %s26 = sphi 0, %s23
      %s40 = sphi 0, %s42
      %s43 = sphi 0, %s40
      %s44 = sphi 0, %s43
      %s60 = sphi 0, %s44
      %s66 = sphi 0, %s68
      %s69 = sphi 0, %s66
      %s70 = sphi 0, %s69
      %s86 = sphi 0, %s70
      %s96 = sphi 0, %s98
      %s99 = sphi 0, %s96
      %s100 = sphi 0, %s99
      %s116 = sphi 0, %s100
    $region4: #{tpu_custom_call.1} parent=1 // loop_header_branch
      %14 = sbr.rel (%p12) target = $region8
    $region5: #{tpu_custom_call.1} parent=1 // loop_body
      %s16 = ssub.s32 %s11, 1
      %s17 = ssub.s32 %s11, 2
      %s27 = sadd.s32 1, %s20
      %p28 = scmp.ge.s32.totalorder %s27, 2
      %s29 = scalar_select %p28, 0, %s27
      %s30 = sadd.s32 1, %s19
      %s31 = scalar_select %p28, %s30, %s19
      %p32 = scmp.ge.s32.totalorder %s31, 1
      %s33 = scalar_select %p32, 0, %s31
      %s34 = sadd.s32 1, %s18
      %s35 = scalar_select %p32, %s34, %s18
      %p36 = scmp.ge.s32.totalorder %s35, 1
      %s37 = scalar_select %p36, 0, %s35
      %s38 = ssub.s32 %s18, %s37
      %p39 = scmp.eq.s32.totalorder %s38, 0
      %s41 = sadd.s32 %s40, 1
      %s42 = scalar_select %p39, %s40, %s41
      %p45 = pneg %p39
      %p46 = scmp.eq.s32.totalorder %s11, 1
      %p47 = por %p45, %p46
      %p48 = scmp.ne.s32.totalorder %s40, %s43
      %p49 = scmp.eq.s32.totalorder %s11, 0
      %p50 = por %p48, %p49
      %p51 = scmp.ne.s32.totalorder %s40, %s43
      %p52 = scmp.eq.s32.totalorder %s16, 1
      %p53 = por %p51, %p52
      %p54 = scmp.ne.s32.totalorder %s43, %s44
      %p55 = scmp.eq.s32.totalorder %s16, 0
      %p56 = por %p54, %p55
      %p57 = scmp.ne.s32.totalorder %s43, %s44
      %p58 = scmp.eq.s32.totalorder %s17, 1
      %p59 = por %p57, %p58
      %p61 = scmp.ne.s32.totalorder %s44, %s60
      %p62 = scmp.eq.s32.totalorder %s17, 0
      %p63 = por %p61, %p62
      %s64 = ssub.s32 %s19, %s33
      %p65 = scmp.eq.s32.totalorder %s64, 0
      %s67 = sadd.s32 %s66, 1
      %s68 = scalar_select %p65, %s66, %s67
      %p71 = pneg %p65
      %p72 = scmp.eq.s32.totalorder %s11, 1
      %p73 = por %p71, %p72
      %p74 = scmp.ne.s32.totalorder %s66, %s69
      %p75 = scmp.eq.s32.totalorder %s11, 0
      %p76 = por %p74, %p75
      %p77 = scmp.ne.s32.totalorder %s66, %s69
      %p78 = scmp.eq.s32.totalorder %s16, 1
      %p79 = por %p77, %p78
      %p80 = scmp.ne.s32.totalorder %s69, %s70
      %p81 = scmp.eq.s32.totalorder %s16, 0
      %p82 = por %p80, %p81
      %p83 = scmp.ne.s32.totalorder %s69, %s70
      %p84 = scmp.eq.s32.totalorder %s17, 1
      %p85 = por %p83, %p84
      %p87 = scmp.ne.s32.totalorder %s70, %s86
      %p88 = scmp.eq.s32.totalorder %s17, 0
      %p89 = por %p87, %p88
      %s90 = sadd.s32 %s20, %s19
      %s91 = sadd.s32 %s29, %s33
      %s92 = ssub.s32 %s18, %s37
      %s93 = ssub.s32 %s90, %s91
      %s94 = sor.u32 %s92, %s93
      %p95 = scmp.eq.s32.totalorder %s94, 0
      %s97 = sadd.s32 %s96, 1
      %s98 = scalar_select %p95, %s96, %s97
      %p101 = pneg %p95
      %p102 = scmp.eq.s32.totalorder %s11, 1
      %p103 = por %p101, %p102
      %p104 = scmp.ne.s32.totalorder %s96, %s99
      %p105 = scmp.eq.s32.totalorder %s11, 0
      %p106 = por %p104, %p105
      %p107 = scmp.ne.s32.totalorder %s96, %s99
      %p108 = scmp.eq.s32.totalorder %s16, 1
      %p109 = por %p107, %p108
      %p110 = scmp.ne.s32.totalorder %s99, %s100
      %p111 = scmp.eq.s32.totalorder %s16, 0
      %p112 = por %p110, %p111
      %p113 = scmp.ne.s32.totalorder %s99, %s100
      %p114 = scmp.eq.s32.totalorder %s17, 1
      %p115 = por %p113, %p114
      %p117 = scmp.ne.s32.totalorder %s100, %s116
      %p118 = scmp.eq.s32.totalorder %s17, 0
      %p119 = por %p117, %p118
      %p120 = scmp.le.s32.totalorder 1, %s11
      %p121 = scmp.lt.s32.totalorder %s11, 3
      %p122 = pnand %p120, %p121
      %p123 = pneg %p122
      // Predicated region
      $region9: #{tpu_custom_call.1} parent=5 // pred_check
        _
      $region10: #{tpu_custom_call.1} parent=5 // pred_check_branch
        %125 = sbr.rel (%p122) target = $region12
      $region11: #{tpu_custom_call.1} parent=5 // pred_region
        %s126 = ssub.s32 %s11, 1
        // Predicated region
        $region13: #{tpu_custom_call.1} parent=11 // pred_check
          %p127 = pneg %p56
        $region14: #{tpu_custom_call.1} parent=11 // pred_check_branch
          %129 = sbr.rel (%p127) target = $region16
        $region15: #{tpu_custom_call.1} parent=11 // pred_region
          %p130 = scmp.lt.s32.totalorder %s21, 0
          %s131 = scalar_select %p130, %s21, 0
          %s132 = smul.addr %s131, 8
          %s133 = scalar_lea.vmem %s0, %s132
        $region16: #{tpu_custom_call.1} parent=11 // pred_fallthru
          _
        // Predicated region
        $region17: #{tpu_custom_call.1} parent=11 // pred_check
          %p134 = pneg %p82
        $region18: #{tpu_custom_call.1} parent=11 // pred_check_branch
          %136 = sbr.rel (%p134) target = $region20
        $region19: #{tpu_custom_call.1} parent=11 // pred_region
          %p137 = scmp.lt.s32.totalorder %s22, 0
          %s138 = scalar_select %p137, %s22, 0
          %s139 = scalar_lea.vmem %s1, %s138
        $region20: #{tpu_custom_call.1} parent=11 // pred_fallthru
          _
      $region12: #{tpu_custom_call.1} parent=5 // pred_fallthru
        _
      %p140 = scmp.lt.s32.totalorder %s11, 2
      // Predicated region
      $region21: #{tpu_custom_call.1} parent=5 // pred_check
        %p141 = pneg %p140
      $region22: #{tpu_custom_call.1} parent=5 // pred_check_branch
        %143 = sbr.rel (%p141) target = $region24
      $region23: #{tpu_custom_call.1} parent=5 // pred_region
        _
      $region24: #{tpu_custom_call.1} parent=5 // pred_fallthru
        _
      %p144 = scmp.le.s32.totalorder 1, %s11
      %p145 = scmp.lt.s32.totalorder %s11, 3
      %p146 = pnand %p144, %p145
      %p147 = pneg %p146
      // Predicated region
      $region25: #{tpu_custom_call.1} parent=5 // pred_check
        _
      $region26: #{tpu_custom_call.1} parent=5 // pred_check_branch
        %149 = sbr.rel (%p146) target = $region28
      $region27: #{tpu_custom_call.1} parent=5 // pred_region
        %s150 = ssub.s32 %s11, 1
        %p151 = scmp.lt.s32.totalorder %s21, 0
        %s152 = scalar_select %p151, %s21, 0
        %s153 = smul.addr %s152, 8
        %s154 = scalar_lea.vmem %s0, %s153
        %p155 = pneg %p56
        %p156 = pneg %p53
        %p157 = scmp.lt.s32.totalorder %s22, 0
        %s158 = scalar_select %p157, %s22, 0
        %s159 = scalar_lea.vmem %s1, %s158
        %p160 = pneg %p82
        %p161 = pneg %p79
        %p162 = pneg %p112
        %p163 = pneg %p109
        %s164 = sand.u32 %s99, 1
        %s165 = scalar_lea.sflag [#allocation3], %s164
        %s166 = sand.u32 %s99, 1
        %s167 = smul.addr %s166, 8
        %s168 = scalar_lea.vmem [#allocation2], %s167
        %p169 = scmp.lt.s32.totalorder %s21, 0
        %s170 = scalar_select %p169, %s21, 0
        %s171 = smul.addr %s170, 8
        %s172 = scalar_lea.vmem %s0, %s171
        %p173 = scmp.lt.s32.totalorder %s22, 0
        %s174 = scalar_select %p173, %s22, 0
        %s175 = scalar_lea.vmem %s1, %s174
        %s176 = sadd.s32 %s23, %s22
        %v177 = vld [vmem:[%s172] sm:$0xff]
        %v178 = vld [vmem:[%s175] sm:$0x1]
        %180 = vset.pattern.permute.xlu0 0
        %181 = vperm.xlu0 %180, %v177
        %v182 = vpop.permute.xlu0 %181
        %v185 = vlaneseq
        %v186 = vshrl.u32 %v185, 7
        %v187 = vsub.s32 0, %v186
        %v188 = vrot.slane %v178, %v187
        %v190 = vmul.f32 %v182, %v188
        %p191 = scmp.eq.s32.totalorder %s23, 0
        // Predicated region
        $region29: #{tpu_custom_call.1} parent=27 // pred_check
          %p192 = pneg %p191
        $region30: #{tpu_custom_call.1} parent=27 // pred_check_branch
          %194 = sbr.rel (%p192) target = $region32
        $region31: #{tpu_custom_call.1} parent=27 // pred_region
          %v195 = vand.u32 2147483647, %v190
          %vm196 = vcmp.le.f32.partialorder %v195, 0.7853982
          %vm197 = vcmp.lt.s32.totalorder %v190, 0
          %v198 = vand.u32 %v190, 2139095040
          %v199 = vshrl.u32 %v198, 23
          %v200 = vsub.s32 %v199, 127
          %v201 = vand.u32 2147483647, %v190
          %v202 = vand.u32 %v201, 8388607
          %v203 = vor.u32 %v202, 8388608
          %v204 = vsub.s32 0, %v203
          %v205 = vadd.s32 %v200, 1
          %vm206 = vcmp.gt.s32.totalorder %v205, 0
          %v207 = vsel %vm206, %v205, 0
          %v208 = vshrl.u32 %v207, 5
          %v209 = vand.u32 %v207, 31
          %v210 = vsub.s32 32, %v209
          %v211 = vshrl.u32 683565275, %v210
          %v212 = vshll.u32 683565275, %v209
          %v213 = vshrl.u32 2475754826, %v210
          %v214 = vor.u32 %v212, %v213
          %v215 = vshll.u32 2475754826, %v209
          %v216 = vshrl.u32 2131351028, %v210
          %v217 = vor.u32 %v215, %v216
          %v218 = vshll.u32 2131351028, %v209
          %v219 = vshrl.u32 2102212464, %v210
          %v220 = vor.u32 %v218, %v219
          %v221 = vshll.u32 2102212464, %v209
          %v222 = vshrl.u32 920167782, %v210
          %v223 = vor.u32 %v221, %v222
          %v224 = vshll.u32 920167782, %v209
          %v225 = vshrl.u32 1326507024, %v210
          %v226 = vor.u32 %v224, %v225
          %vm227 = vcmp.lt.s32.totalorder %v208, 1
          %vm228 = vcmp.lt.s32.totalorder %v208, 2
          %vm229 = vcmp.lt.s32.totalorder %v208, 3
          %vm230 = vcmp.lt.s32.totalorder %v208, 4
          %v231 = vsel %vm227, %v211, %v214
          %v232 = vsel %vm230, %v220, 2102212464
          %v233 = vsel %vm229, %v217, %v232
          %v234 = vsel %vm228, %v231, %v233
          %v235 = vsel %vm227, %v214, %v217
          %v236 = vsel %vm230, %v223, 920167782
          %v237 = vsel %vm229, %v220, %v236
          %v238 = vsel %vm228, %v235, %v237
          %v239 = vsel %vm227, %v217, %v220
          %v240 = vsel %vm230, %v226, 1326507024
          %v241 = vsel %vm229, %v223, %v240
          %v242 = vsel %vm228, %v239, %v241
          %v243 = vshll.u32 %v203, 8
          %v244 = vmul.u32.u64.compose %v243, %v242
          %v245 = vextract.low.u32 %v244
          %v246 = vextract.high.u32 %v244
          %v247 = vmul.u32.u64.compose %v243, %v238
          %v248 = vextract.low.u32 %v247
          %v249 = vextract.high.u32 %v247
          %v250 = vmul.u32 %v243, %v234
          %v251 = vadd.s32 %v246, %v248
          %vm252 = vc.u32 %v246, %v248
          %v253 = vadd.s32 %v249, 1
          %v254 = vsel %vm252, %v253, %v249
          %v255 = vadd.s32 %v250, %v254
          %v256 = vadd.s32 %v255, 536870912
          %v257 = vshrl.u32 %v256, 30
          %v258 = vshll.u32 %v257, 30
          %v259 = vsub.s32 %v255, %v258
          %vm260 = vcmp.lt.s32.totalorder %v259, 0
          %v261 = vsub.s32 0, %v259
          %v262 = vsel %vm260, %v261, %v259
          %v263 = vclz %v262
          %v264 = vsub.s32 %v263, 2
          %vm265 = vcmp.gt.s32.totalorder 0, %v264
          %v266 = vsel %vm265, 0, %v264
          %v267 = vsub.s32 32, %v266
          %v268 = vshll.u32 %v259, %v266
          %v269 = vshrl.u32 %v251, %v267
          %v270 = vor.u32 %v268, %v269
          %v271 = vsub.s32 4294967266, %v266
          %v272 = vadd.s32 %v271, 127
          %v273 = vshll.u32 %v272, 23
          %v274 = vor.u32 4788187, %v273
          %v275 = vand.u32 2147483647, %v274
          %v277 = vcvt.s32.f32 %v270
          %v278 = vmul.f32 %v277, %v275
          %v279 = vxor.u32 %v278, 2147483648
          %v280 = vsel %vm197, %v279, %v278
          %v281 = vsub.s32 4, %v257
          %v282 = vsel %vm197, %v281, %v257
          %v283 = vsel %vm196, %v190, %v280
          %v284 = vsel %vm196, 0, %v282
          %v285 = vcosq.f32.pop %v283
          %v286 = vsinq.f32.pop %v283
          %vm287 = vweird.f32 %v190
          %v288 = vadd.s32 %v284, 3
          %v289 = vand.u32 %v288, 3
          %vm290 = vcmp.lt.s32.totalorder %v289, 2
          %vm291 = vcmp.eq.s32.totalorder %v289, 0
          %v292 = vxor.u32 %v286, 2147483648
          %v293 = vsel %vm291, %v285, %v292
          %vm294 = vcmp.eq.s32.totalorder %v289, 2
          %v295 = vxor.u32 %v285, 2147483648
          %v296 = vsel %vm294, %v295, %v286
          %v297 = vsel %vm290, %v293, %v296
          %v298 = vsel %vm287, nan, %v297
          %299 = vst [vmem:[%s168] sm:$0xff] %v298
        $region32: #{tpu_custom_call.1} parent=27 // pred_fallthru
          _
        %p300 = scmp.eq.s32.totalorder %s23, 1
        // Predicated region
        $region33: #{tpu_custom_call.1} parent=27 // pred_check
          %p301 = pneg %p300
        $region34: #{tpu_custom_call.1} parent=27 // pred_check_branch
          %303 = sbr.rel (%p301) target = $region36
        $region35: #{tpu_custom_call.1} parent=27 // pred_region
          %v304 = vand.u32 2147483647, %v190
          %vm305 = vcmp.le.f32.partialorder %v304, 0.7853982
          %vm306 = vcmp.lt.s32.totalorder %v190, 0
          %v307 = vand.u32 %v190, 2139095040
          %v308 = vshrl.u32 %v307, 23
          %v309 = vsub.s32 %v308, 127
          %v310 = vand.u32 2147483647, %v190
          %v311 = vand.u32 %v310, 8388607
          %v312 = vor.u32 %v311, 8388608
          %v313 = vsub.s32 0, %v312
          %v314 = vadd.s32 %v309, 1
          %vm315 = vcmp.gt.s32.totalorder %v314, 0
          %v316 = vsel %vm315, %v314, 0
          %v317 = vshrl.u32 %v316, 5
          %v318 = vand.u32 %v316, 31
          %v319 = vsub.s32 32, %v318
          %v320 = vshrl.u32 683565275, %v319
          %v321 = vshll.u32 683565275, %v318
          %v322 = vshrl.u32 2475754826, %v319
          %v323 = vor.u32 %v321, %v322
          %v324 = vshll.u32 2475754826, %v318
          %v325 = vshrl.u32 2131351028, %v319
          %v326 = vor.u32 %v324, %v325
          %v327 = vshll.u32 2131351028, %v318
          %v328 = vshrl.u32 2102212464, %v319
          %v329 = vor.u32 %v327, %v328
          %v330 = vshll.u32 2102212464, %v318
          %v331 = vshrl.u32 920167782, %v319
          %v332 = vor.u32 %v330, %v331
          %v333 = vshll.u32 920167782, %v318
          %v334 = vshrl.u32 1326507024, %v319
          %v335 = vor.u32 %v333, %v334
          %vm336 = vcmp.lt.s32.totalorder %v317, 1
          %vm337 = vcmp.lt.s32.totalorder %v317, 2
          %vm338 = vcmp.lt.s32.totalorder %v317, 3
          %vm339 = vcmp.lt.s32.totalorder %v317, 4
          %v340 = vsel %vm336, %v320, %v323
          %v341 = vsel %vm339, %v329, 2102212464
          %v342 = vsel %vm338, %v326, %v341
          %v343 = vsel %vm337, %v340, %v342
          %v344 = vsel %vm336, %v323, %v326
          %v345 = vsel %vm339, %v332, 920167782
          %v346 = vsel %vm338, %v329, %v345
          %v347 = vsel %vm337, %v344, %v346
          %v348 = vsel %vm336, %v326, %v329
          %v349 = vsel %vm339, %v335, 1326507024
          %v350 = vsel %vm338, %v332, %v349
          %v351 = vsel %vm337, %v348, %v350
          %v352 = vshll.u32 %v312, 8
          %v353 = vmul.u32.u64.compose %v352, %v351
          %v354 = vextract.low.u32 %v353
          %v355 = vextract.high.u32 %v353
          %v356 = vmul.u32.u64.compose %v352, %v347
          %v357 = vextract.low.u32 %v356
          %v358 = vextract.high.u32 %v356
          %v359 = vmul.u32 %v352, %v343
          %v360 = vadd.s32 %v355, %v357
          %vm361 = vc.u32 %v355, %v357
          %v362 = vadd.s32 %v358, 1
          %v363 = vsel %vm361, %v362, %v358
          %v364 = vadd.s32 %v359, %v363
          %v365 = vadd.s32 %v364, 536870912
          %v366 = vshrl.u32 %v365, 30
          %v367 = vshll.u32 %v366, 30
          %v368 = vsub.s32 %v364, %v367
          %vm369 = vcmp.lt.s32.totalorder %v368, 0
          %v370 = vsub.s32 0, %v368
          %v371 = vsel %vm369, %v370, %v368
          %v372 = vclz %v371
          %v373 = vsub.s32 %v372, 2
          %vm374 = vcmp.gt.s32.totalorder 0, %v373
          %v375 = vsel %vm374, 0, %v373
          %v376 = vsub.s32 32, %v375
          %v377 = vshll.u32 %v368, %v375
          %v378 = vshrl.u32 %v360, %v376
          %v379 = vor.u32 %v377, %v378
          %v380 = vsub.s32 4294967266, %v375
          %v381 = vadd.s32 %v380, 127
          %v382 = vshll.u32 %v381, 23
          %v383 = vor.u32 4788187, %v382
          %v384 = vand.u32 2147483647, %v383
          %v386 = vcvt.s32.f32 %v379
          %v387 = vmul.f32 %v386, %v384
          %v388 = vxor.u32 %v387, 2147483648
          %v389 = vsel %vm306, %v388, %v387
          %v390 = vsub.s32 4, %v366
          %v391 = vsel %vm306, %v390, %v366
          %v392 = vsel %vm305, %v190, %v389
          %v393 = vsel %vm305, 0, %v391
          %v394 = vcosq.f32.pop %v392
          %v395 = vsinq.f32.pop %v392
          %vm396 = vweird.f32 %v190
          %v397 = vand.u32 %v393, 3
          %vm398 = vcmp.lt.s32.totalorder %v397, 2
          %vm399 = vcmp.eq.s32.totalorder %v397, 0
          %v400 = vxor.u32 %v395, 2147483648
          %v401 = vsel %vm399, %v394, %v400
          %vm402 = vcmp.eq.s32.totalorder %v397, 2
          %v403 = vxor.u32 %v394, 2147483648
          %v404 = vsel %vm402, %v403, %v395
          %v405 = vsel %vm398, %v401, %v404
          %v406 = vsel %vm396, nan, %v405
          %407 = vst [vmem:[%s168] sm:$0xff] %v406
        $region36: #{tpu_custom_call.1} parent=27 // pred_fallthru
          _
        %s408 = sand.u32 %s99, 1
        %s409 = scalar_lea.sflag [#allocation3], %s408
        %s410 = sand.u32 %s99, 1
        %s411 = smul.addr %s410, 8
        %s412 = scalar_lea.vmem [#allocation2], %s411
        // Predicated region
        $region37: #{tpu_custom_call.1} parent=27 // pred_check
          %p413 = pneg %p109
        $region38: #{tpu_custom_call.1} parent=27 // pred_check_branch
          %415 = sbr.rel (%p413) target = $region40
        $region39: #{tpu_custom_call.1} parent=27 // pred_region
          %s416 = sadd.s32 %s23, %s22
          %s418 = ssub.s32 128, 128
          %419 = vsyncadd %s409, %s418
          %s420 = smul.addr %s21, 2
          %s421 = sadd.s32 %s416, %s420
          %s422 = smul.addr %s421, 128
          %s423 = scalar_lea.hbm %s2, %s422
          %s425 = sshll.u32 %s412, 4
          %s426 = int_to_ptr.vmem [resolvable:$true] %s425
          %428 = dma.vmem_to_hbm [thread:$0]  %s426, 128, %s423, %s409
        $region40: #{tpu_custom_call.1} parent=27 // pred_fallthru
          _
      $region28: #{tpu_custom_call.1} parent=5 // pred_fallthru
        _
      %p429 = scmp.le.s32.totalorder 2, %s11
      // Predicated region
      $region41: #{tpu_custom_call.1} parent=5 // pred_check
        %p430 = pneg %p429
      $region42: #{tpu_custom_call.1} parent=5 // pred_check_branch
        %432 = sbr.rel (%p430) target = $region44
      $region43: #{tpu_custom_call.1} parent=5 // pred_region
        %s433 = ssub.s32 %s11, 2
        // Predicated region
        $region45: #{tpu_custom_call.1} parent=43 // pred_check
          %p434 = pneg %p115
        $region46: #{tpu_custom_call.1} parent=43 // pred_check_branch
          %436 = sbr.rel (%p434) target = $region48
        $region47: #{tpu_custom_call.1} parent=43 // pred_region
          %s437 = sand.u32 %s100, 1
          %s438 = scalar_lea.sflag [#allocation3], %s437
          %s439 = sand.u32 %s100, 1
          %s440 = smul.addr %s439, 8
          %s441 = scalar_lea.vmem [#allocation2], %s440
          %442 = dma.done %s438, 128
        $region48: #{tpu_custom_call.1} parent=43 // pred_fallthru
          _
      $region44: #{tpu_custom_call.1} parent=5 // pred_fallthru
        _
    $region6: #{tpu_custom_call.1} parent=1 // loop_footer
      %s15 = sadd.s32 1, %s11
    $region7: #{tpu_custom_call.1} parent=1 // loop_footer_branch
      %10 = sbr.rel target = $region3
    $region8: #{tpu_custom_call.1} parent=1 // loop_exit
      _
    %443 = vsyncpa [#allocation3], 1
    %s444 = scalar_lea.sflag [#allocation3], 1
    %445 = vsyncpa %s444, 1

</llo_original>
